<compile_context>
chip_gen: v7x
topology: tpu7x:2x2x1
jax: 0.10.0
libtpu: 0.0.40
codegen_flags: <defaults>
</compile_context>

<pallas_src>
import numpy as np
import jax
import jax.numpy as jnp
from jax.experimental import pallas as pl
from jax.experimental.pallas import tpu as pltpu


def channel_attention(x_nchw, params, eps=1e-5):
    x_nchw = x_nchw.astype(jnp.float32)
    N, C, H, W = x_nchw.shape
    L = H * W
    if L % 128 != 0:
        raise ValueError(
            "channel_attention kernel assumes H*W is a multiple of 128 "
            f"(lane-dense layout); got H*W={L}")
    Cp = ((C + 7) // 8) * 8          # pad channels to a full sublane tile
    R = C // 2                        # SE reduction width

    x = x_nchw.reshape(N, C, L)                       # contiguous -> free reshape
    if Cp != C:
        x = jnp.pad(x, ((0, 0), (0, Cp - C), (0, 0)))

    # Fold conv bias + BatchNorm (inference) into the conv weights / one shift.
    def fold_conv_bn(w, b, g, be, m, v):
        s = g / jnp.sqrt(v + eps)                     # (C,)
        w = w * s[None, None, None, :]                # scale Cout of HWIO weight
        t = b * s + be - m * s                        # (C,) folded bias+BN shift
        wm = jnp.transpose(w.reshape(9, C, C), (2, 0, 1))   # (Cout, 9, Cin)
        wm = jnp.pad(wm, ((0, Cp - C), (0, 0), (0, Cp - C)))
        wm = wm.reshape(Cp, 9 * Cp)                   # [co, k*Cp + ci]
        tf = jnp.broadcast_to(jnp.pad(t, (0, Cp - C)).reshape(Cp, 1), (Cp, L))
        return wm, tf

    wf1, t1 = fold_conv_bn(params["w1"], params["b1"], params["g1"],
                           params["be1"], params["m1"], params["v1"])
    wf2, t2 = fold_conv_bn(params["w2"], params["b2"], params["g2"],
                           params["be2"], params["m2"], params["v2"])

    fc1 = jnp.pad(params["fc1"], ((0, Cp - C), (0, 0)))                  # (Cp, R)
    fc2t = jnp.pad(jnp.transpose(params["fc2"]), ((0, Cp - C), (0, 0)))  # (Cp, R)

    # Static 3x3 taps (a = row offset, b = col offset), k = (a+1)*3 + (b+1).
    taps = [(a, b) for a in (-1, 0, 1) for b in (-1, 0, 1)]
    shifts = [a * W + b for a, b in taps]
    needs_mask = [a != 0 or b != 0 for a, b in taps]

    # Host-precomputed 0/1 boundary masks, stacked to match the tap stack.
    idx = np.arange(L)
    row, col = idx // W, idx % W
    mrows = []
    for a, b in taps:
        m = np.ones(L, np.float32)
        if a == -1:
            m = m * (row >= 1)
        if a == 1:
            m = m * (row <= H - 2)
        if b == -1:
            m = m * (col >= 1)
        if b == 1:
            m = m * (col <= W - 2)
        mrows.append(np.broadcast_to(m.astype(np.float32), (Cp, L)))
    mask = jnp.asarray(np.concatenate(mrows, axis=0))                    # (9*Cp, L)

    def kernel(x_ref, mask_ref, w1_ref, t1_ref, w2_ref, t2_ref,
               fc1_ref, fc2t_ref, out_ref, stk_ref):
        xin = x_ref[0]                                 # (Cp, L) channel-major plane

        def conv_bn(inp, w_ref, t_ref):
            # "same" 3x3 conv: 9 static lane-rolls (XLU) * precomputed boundary
            # masks, stacked into VMEM scratch, contracted with one MXU dot.
            # BN scale and conv bias already folded into w_ref / t_ref.
            for k, s in enumerate(shifts):
                plane = inp if s == 0 else pltpu.roll(inp, shift=(-s) % L, axis=1)
                if needs_mask[k]:
                    plane = plane * mask_ref[pl.ds(k * Cp, Cp), :]
                stk_ref[pl.ds(k * Cp, Cp), :] = plane
            y = jnp.dot(w_ref[...], stk_ref[...],
                        preferred_element_type=jnp.float32)
            return y + t_ref[...]

        x1 = jnp.maximum(conv_bn(xin, w1_ref, t1_ref), 0.0)   # conv1+bn1+relu
        x2 = conv_bn(x1, w2_ref, t2_ref)                      # conv2+bn2

        # SE head: GAP -> fc1 -> relu -> fc2 -> sigmoid (tiny; VPU/XLU/EUP).
        gap = jnp.sum(x2, axis=1, keepdims=True) * (1.0 / L)             # (Cp, 1)
        hid = jnp.maximum(jnp.sum(gap * fc1_ref[...], axis=0, keepdims=True), 0.0)
        se = jax.nn.sigmoid(jnp.sum(fc2t_ref[...] * hid, axis=1, keepdims=True))

        # scale the ORIGINAL input (already VMEM-resident, no second HBM copy)
        out_ref[0] = (xin * se).astype(out_ref.dtype)

    def const_spec(shape):
        zeros = (0,) * len(shape)
        return pl.BlockSpec(shape, lambda n, _z=zeros: _z)

    out = pl.pallas_call(
        kernel,
        out_shape=jax.ShapeDtypeStruct((N, Cp, L), jnp.float32),
        grid=(N,),
        in_specs=[
            pl.BlockSpec((1, Cp, L), lambda n: (n, 0, 0)),   # x (lane-dense)
            const_spec((9 * Cp, L)),                         # boundary masks
            const_spec((Cp, 9 * Cp)), const_spec((Cp, L)),   # conv1 (BN folded)
            const_spec((Cp, 9 * Cp)), const_spec((Cp, L)),   # conv2 (BN folded)
            const_spec((Cp, R)), const_spec((Cp, R)),        # fc1, fc2^T
        ],
        out_specs=pl.BlockSpec((1, Cp, L), lambda n: (n, 0, 0)),
        scratch_shapes=[pltpu.VMEM((9 * Cp, L), jnp.float32)],   # tap stack
        compiler_params=pltpu.CompilerParams(
            dimension_semantics=("parallel",)),              # v7x: 2 TCs / batch
    )(x, mask, wf1, t1, wf2, t2, fc1, fc2t)

    return out[:, :C, :].reshape(N, C, H, W)                 # drop pad, back to NCHW


def reference(x_nchw, params, eps=1e-5):
    # Pure-JAX ground truth (high precision; independent of the kernel path).
    x = jnp.transpose(x_nchw, (0, 2, 3, 1)).astype(jnp.float32)   # NHWC

    def bn(y, g, b, m, v):
        return (y - m) / jnp.sqrt(v + eps) * g + b

    y = jax.lax.conv_general_dilated(
        x, params["w1"], (1, 1), "SAME",
        dimension_numbers=("NHWC", "HWIO", "NHWC"),
        precision=jax.lax.Precision.HIGHEST) + params["b1"]
    y = jnp.maximum(bn(y, params["g1"], params["be1"], params["m1"], params["v1"]), 0.0)
    y = jax.lax.conv_general_dilated(
        y, params["w2"], (1, 1), "SAME",
        dimension_numbers=("NHWC", "HWIO", "NHWC"),
        precision=jax.lax.Precision.HIGHEST) + params["b2"]
    y = bn(y, params["g2"], params["be2"], params["m2"], params["v2"])
    se = jnp.mean(y, axis=(1, 2))                                      # (N, C)
    se = jnp.maximum(jnp.dot(se, params["fc1"],
                             precision=jax.lax.Precision.HIGHEST), 0.0)
    se = jax.nn.sigmoid(jnp.dot(se, params["fc2"],
                                precision=jax.lax.Precision.HIGHEST))
    out = x * se[:, None, None, :]
    return jnp.transpose(out, (0, 3, 1, 2))


def init_params(key, C):
    ks = jax.random.split(key, 10)
    return {
        "w1": jax.random.normal(ks[0], (3, 3, C, C), jnp.float32) * 0.2,
        "b1": jax.random.normal(ks[1], (C,), jnp.float32) * 0.1,
        "w2": jax.random.normal(ks[2], (3, 3, C, C), jnp.float32) * 0.2,
        "b2": jax.random.normal(ks[3], (C,), jnp.float32) * 0.1,
        "g1": 1.0 + 0.1 * jax.random.normal(ks[4], (C,), jnp.float32),
        "be1": 0.1 * jax.random.normal(ks[5], (C,), jnp.float32),
        "m1": 0.1 * jax.random.normal(ks[6], (C,), jnp.float32),
        "v1": 1.0 + 0.1 * jnp.abs(jax.random.normal(ks[7], (C,), jnp.float32)),
        "g2": jnp.ones((C,), jnp.float32),
        "be2": jnp.zeros((C,), jnp.float32),
        "m2": jnp.zeros((C,), jnp.float32),
        "v2": jnp.ones((C,), jnp.float32),
        "fc1": jax.random.normal(ks[8], (C, C // 2), jnp.float32) * 0.3,
        "fc2": jax.random.normal(ks[9], (C // 2, C), jnp.float32) * 0.3,
    }


if __name__ == "__main__":
    key = jax.random.PRNGKey(0)
    kx, kp = jax.random.split(key)
    N, C, H, W = 2, 4, 16, 16
    x = jax.random.normal(kx, (N, C, H, W), jnp.float32)   # NCHW, like PyTorch
    params = init_params(kp, C)

    out = jax.block_until_ready(channel_attention(x, params))
    ref = jax.block_until_ready(reference(x, params))
    np.testing.assert_allclose(np.asarray(out), np.asarray(ref), rtol=2e-3, atol=2e-3)

    print("KERNEL_OK")
</pallas_src>

<mosaic_0001>
module attributes {stable_mosaic.version = 11 : i64} {
  func.func @kernel(%arg0: i32, %arg1: memref<1x8x256xf32, #tpu.memory_space<vmem>>, %arg2: memref<72x256xf32, #tpu.memory_space<vmem>>, %arg3: memref<8x72xf32, #tpu.memory_space<vmem>>, %arg4: memref<8x256xf32, #tpu.memory_space<vmem>>, %arg5: memref<8x72xf32, #tpu.memory_space<vmem>>, %arg6: memref<8x256xf32, #tpu.memory_space<vmem>>, %arg7: memref<8x2xf32, #tpu.memory_space<vmem>>, %arg8: memref<8x2xf32, #tpu.memory_space<vmem>>, %arg9: memref<1x8x256xf32, #tpu.memory_space<vmem>>, %arg10: memref<72x256xf32, #tpu.memory_space<vmem>>) attributes {dimension_semantics = [#tpu.dimension_semantics<parallel>], iteration_bounds = array<i64: 2>, scalar_prefetch = 0 : i64, scratch_operands = 1 : i64, tpu.core_type = #tpu.core_type<tc>, window_params = [{transform_indices = @transform_0, window_bounds = array<i64: 1, 8, 256>}, {pipeline_mode = #tpu.pipeline_mode<synchronous>, transform_indices = @transform_1, window_bounds = array<i64: 72, 256>}, {pipeline_mode = #tpu.pipeline_mode<synchronous>, transform_indices = @transform_2, window_bounds = array<i64: 8, 72>}, {pipeline_mode = #tpu.pipeline_mode<synchronous>, transform_indices = @transform_3, window_bounds = array<i64: 8, 256>}, {pipeline_mode = #tpu.pipeline_mode<synchronous>, transform_indices = @transform_4, window_bounds = array<i64: 8, 72>}, {pipeline_mode = #tpu.pipeline_mode<synchronous>, transform_indices = @transform_5, window_bounds = array<i64: 8, 256>}, {pipeline_mode = #tpu.pipeline_mode<synchronous>, transform_indices = @transform_6, window_bounds = array<i64: 8, 2>}, {pipeline_mode = #tpu.pipeline_mode<synchronous>, transform_indices = @transform_7, window_bounds = array<i64: 8, 2>}, {transform_indices = @transform_8, window_bounds = array<i64: 1, 8, 256>}]} {
    %c0 = arith.constant 0 : index
    %c0_0 = arith.constant 0 : index
    %c0_1 = arith.constant 0 : index
    %0 = vector.load %arg1[%c0, %c0_0, %c0_1] : memref<1x8x256xf32, #tpu.memory_space<vmem>>, vector<1x8x256xf32>
    %1 = vector.shape_cast %0 : vector<1x8x256xf32> to vector<8x256xf32>
    %c17_i32 = arith.constant 17 : i32
    %2 = tpu.dynamic_rotate %1 by %c17_i32 dim 1 : vector<8x256xf32>, i32 -> vector<8x256xf32>
    %c0_2 = arith.constant 0 : index
    %c0_3 = arith.constant 0 : index
    %3 = vector.load %arg2[%c0_2, %c0_3] : memref<72x256xf32, #tpu.memory_space<vmem>>, vector<8x256xf32>
    %4 = arith.mulf %2, %3 : vector<8x256xf32>
    %c0_4 = arith.constant 0 : index
    %c0_5 = arith.constant 0 : index
    %5 = vector.load %arg10[%c0_4, %c0_5] : memref<72x256xf32, #tpu.memory_space<vmem>>, vector<8x256xf32>
    tpu.vector_store %arg10[%c0_4, %c0_5], %4 {strides = array<i32>} : memref<72x256xf32, #tpu.memory_space<vmem>>, vector<8x256xf32>,
    %c16_i32 = arith.constant 16 : i32
    %6 = tpu.dynamic_rotate %1 by %c16_i32 dim 1 : vector<8x256xf32>, i32 -> vector<8x256xf32>
    %c8 = arith.constant 8 : index
    %c0_6 = arith.constant 0 : index
    %7 = vector.load %arg2[%c8, %c0_6] : memref<72x256xf32, #tpu.memory_space<vmem>>, vector<8x256xf32>
    %8 = arith.mulf %6, %7 : vector<8x256xf32>
    %c8_7 = arith.constant 8 : index
    %c0_8 = arith.constant 0 : index
    %9 = vector.load %arg10[%c8_7, %c0_8] : memref<72x256xf32, #tpu.memory_space<vmem>>, vector<8x256xf32>
    tpu.vector_store %arg10[%c8_7, %c0_8], %8 {strides = array<i32>} : memref<72x256xf32, #tpu.memory_space<vmem>>, vector<8x256xf32>,
    %c15_i32 = arith.constant 15 : i32
    %10 = tpu.dynamic_rotate %1 by %c15_i32 dim 1 : vector<8x256xf32>, i32 -> vector<8x256xf32>
    %c16 = arith.constant 16 : index
    %c0_9 = arith.constant 0 : index
    %11 = vector.load %arg2[%c16, %c0_9] : memref<72x256xf32, #tpu.memory_space<vmem>>, vector<8x256xf32>
    %12 = arith.mulf %10, %11 : vector<8x256xf32>
    %c16_10 = arith.constant 16 : index
    %c0_11 = arith.constant 0 : index
    %13 = vector.load %arg10[%c16_10, %c0_11] : memref<72x256xf32, #tpu.memory_space<vmem>>, vector<8x256xf32>
    tpu.vector_store %arg10[%c16_10, %c0_11], %12 {strides = array<i32>} : memref<72x256xf32, #tpu.memory_space<vmem>>, vector<8x256xf32>,
    %c1_i32 = arith.constant 1 : i32
    %14 = tpu.dynamic_rotate %1 by %c1_i32 dim 1 : vector<8x256xf32>, i32 -> vector<8x256xf32>
    %c24 = arith.constant 24 : index
    %c0_12 = arith.constant 0 : index
    %15 = vector.load %arg2[%c24, %c0_12] : memref<72x256xf32, #tpu.memory_space<vmem>>, vector<8x256xf32>
    %16 = arith.mulf %14, %15 : vector<8x256xf32>
    %c24_13 = arith.constant 24 : index
    %c0_14 = arith.constant 0 : index
    %17 = vector.load %arg10[%c24_13, %c0_14] : memref<72x256xf32, #tpu.memory_space<vmem>>, vector<8x256xf32>
    tpu.vector_store %arg10[%c24_13, %c0_14], %16 {strides = array<i32>} : memref<72x256xf32, #tpu.memory_space<vmem>>, vector<8x256xf32>,
    %c32 = arith.constant 32 : index
    %c0_15 = arith.constant 0 : index
    %18 = vector.load %arg10[%c32, %c0_15] : memref<72x256xf32, #tpu.memory_space<vmem>>, vector<8x256xf32>
    tpu.vector_store %arg10[%c32, %c0_15], %1 {strides = array<i32>} : memref<72x256xf32, #tpu.memory_space<vmem>>, vector<8x256xf32>,
    %c255_i32 = arith.constant 255 : i32
    %19 = tpu.dynamic_rotate %1 by %c255_i32 dim 1 : vector<8x256xf32>, i32 -> vector<8x256xf32>
    %c40 = arith.constant 40 : index
    %c0_16 = arith.constant 0 : index
    %20 = vector.load %arg2[%c40, %c0_16] : memref<72x256xf32, #tpu.memory_space<vmem>>, vector<8x256xf32>
    %21 = arith.mulf %19, %20 : vector<8x256xf32>
    %c40_17 = arith.constant 40 : index
    %c0_18 = arith.constant 0 : index
    %22 = vector.load %arg10[%c40_17, %c0_18] : memref<72x256xf32, #tpu.memory_space<vmem>>, vector<8x256xf32>
    tpu.vector_store %arg10[%c40_17, %c0_18], %21 {strides = array<i32>} : memref<72x256xf32, #tpu.memory_space<vmem>>, vector<8x256xf32>,
    %c241_i32 = arith.constant 241 : i32
    %23 = tpu.dynamic_rotate %1 by %c241_i32 dim 1 : vector<8x256xf32>, i32 -> vector<8x256xf32>
    %c48 = arith.constant 48 : index
    %c0_19 = arith.constant 0 : index
    %24 = vector.load %arg2[%c48, %c0_19] : memref<72x256xf32, #tpu.memory_space<vmem>>, vector<8x256xf32>
    %25 = arith.mulf %23, %24 : vector<8x256xf32>
    %c48_20 = arith.constant 48 : index
    %c0_21 = arith.constant 0 : index
    %26 = vector.load %arg10[%c48_20, %c0_21] : memref<72x256xf32, #tpu.memory_space<vmem>>, vector<8x256xf32>
    tpu.vector_store %arg10[%c48_20, %c0_21], %25 {strides = array<i32>} : memref<72x256xf32, #tpu.memory_space<vmem>>, vector<8x256xf32>,
    %c240_i32 = arith.constant 240 : i32
    %27 = tpu.dynamic_rotate %1 by %c240_i32 dim 1 : vector<8x256xf32>, i32 -> vector<8x256xf32>
    %c56 = arith.constant 56 : index
    %c0_22 = arith.constant 0 : index
    %28 = vector.load %arg2[%c56, %c0_22] : memref<72x256xf32, #tpu.memory_space<vmem>>, vector<8x256xf32>
    %29 = arith.mulf %27, %28 : vector<8x256xf32>
    %c56_23 = arith.constant 56 : index
    %c0_24 = arith.constant 0 : index
    %30 = vector.load %arg10[%c56_23, %c0_24] : memref<72x256xf32, #tpu.memory_space<vmem>>, vector<8x256xf32>
    tpu.vector_store %arg10[%c56_23, %c0_24], %29 {strides = array<i32>} : memref<72x256xf32, #tpu.memory_space<vmem>>, vector<8x256xf32>,
    %c239_i32 = arith.constant 239 : i32
    %31 = tpu.dynamic_rotate %1 by %c239_i32 dim 1 : vector<8x256xf32>, i32 -> vector<8x256xf32>
    %c64 = arith.constant 64 : index
    %c0_25 = arith.constant 0 : index
    %32 = vector.load %arg2[%c64, %c0_25] : memref<72x256xf32, #tpu.memory_space<vmem>>, vector<8x256xf32>
    %33 = arith.mulf %31, %32 : vector<8x256xf32>
    %c64_26 = arith.constant 64 : index
    %c0_27 = arith.constant 0 : index
    %34 = vector.load %arg10[%c64_26, %c0_27] : memref<72x256xf32, #tpu.memory_space<vmem>>, vector<8x256xf32>
    tpu.vector_store %arg10[%c64_26, %c0_27], %33 {strides = array<i32>} : memref<72x256xf32, #tpu.memory_space<vmem>>, vector<8x256xf32>,
    %c0_28 = arith.constant 0 : index
    %c0_29 = arith.constant 0 : index
    %35 = vector.load %arg3[%c0_28, %c0_29] : memref<8x72xf32, #tpu.memory_space<vmem>>, vector<8x72xf32>
    %c0_30 = arith.constant 0 : index
    %c0_31 = arith.constant 0 : index
    %36 = vector.load %arg10[%c0_30, %c0_31] : memref<72x256xf32, #tpu.memory_space<vmem>>, vector<72x256xf32>
    %cst = arith.constant dense<0.000000e+00> : vector<8x256xf32>
    %37 = tpu.matmul %35, %36, %cst {dimension_numbers = #tpu.dot_dimension_numbers<[1], [0], [0], [1], [0, 0, 1, 1], [], []>} : vector<8x72xf32>, vector<72x256xf32>, vector<8x256xf32> -> vector<8x256xf32>
    %c0_32 = arith.constant 0 : index
    %c0_33 = arith.constant 0 : index
    %38 = vector.load %arg4[%c0_32, %c0_33] : memref<8x256xf32, #tpu.memory_space<vmem>>, vector<8x256xf32>
    %39 = arith.addf %37, %38 : vector<8x256xf32>
    %cst_34 = arith.constant 0.000000e+00 : f32
    %40 = vector.broadcast %cst_34 : f32 to vector<8x256xf32>
    %41 = arith.maximumf %39, %40 : vector<8x256xf32>
    %c17_i32_35 = arith.constant 17 : i32
    %42 = tpu.dynamic_rotate %41 by %c17_i32_35 dim 1 : vector<8x256xf32>, i32 -> vector<8x256xf32>
    %c0_36 = arith.constant 0 : index
    %c0_37 = arith.constant 0 : index
    %43 = vector.load %arg2[%c0_36, %c0_37] : memref<72x256xf32, #tpu.memory_space<vmem>>, vector<8x256xf32>
    %44 = arith.mulf %42, %43 : vector<8x256xf32>
    %c0_38 = arith.constant 0 : index
    %c0_39 = arith.constant 0 : index
    %45 = vector.load %arg10[%c0_38, %c0_39] : memref<72x256xf32, #tpu.memory_space<vmem>>, vector<8x256xf32>
    tpu.vector_store %arg10[%c0_38, %c0_39], %44 {strides = array<i32>} : memref<72x256xf32, #tpu.memory_space<vmem>>, vector<8x256xf32>,
    %c16_i32_40 = arith.constant 16 : i32
    %46 = tpu.dynamic_rotate %41 by %c16_i32_40 dim 1 : vector<8x256xf32>, i32 -> vector<8x256xf32>
    %c8_41 = arith.constant 8 : index
    %c0_42 = arith.constant 0 : index
    %47 = vector.load %arg2[%c8_41, %c0_42] : memref<72x256xf32, #tpu.memory_space<vmem>>, vector<8x256xf32>
    %48 = arith.mulf %46, %47 : vector<8x256xf32>
    %c8_43 = arith.constant 8 : index
    %c0_44 = arith.constant 0 : index
    %49 = vector.load %arg10[%c8_43, %c0_44] : memref<72x256xf32, #tpu.memory_space<vmem>>, vector<8x256xf32>
    tpu.vector_store %arg10[%c8_43, %c0_44], %48 {strides = array<i32>} : memref<72x256xf32, #tpu.memory_space<vmem>>, vector<8x256xf32>,
    %c15_i32_45 = arith.constant 15 : i32
    %50 = tpu.dynamic_rotate %41 by %c15_i32_45 dim 1 : vector<8x256xf32>, i32 -> vector<8x256xf32>
    %c16_46 = arith.constant 16 : index
    %c0_47 = arith.constant 0 : index
    %51 = vector.load %arg2[%c16_46, %c0_47] : memref<72x256xf32, #tpu.memory_space<vmem>>, vector<8x256xf32>
    %52 = arith.mulf %50, %51 : vector<8x256xf32>
    %c16_48 = arith.constant 16 : index
    %c0_49 = arith.constant 0 : index
    %53 = vector.load %arg10[%c16_48, %c0_49] : memref<72x256xf32, #tpu.memory_space<vmem>>, vector<8x256xf32>
    tpu.vector_store %arg10[%c16_48, %c0_49], %52 {strides = array<i32>} : memref<72x256xf32, #tpu.memory_space<vmem>>, vector<8x256xf32>,
    %c1_i32_50 = arith.constant 1 : i32
    %54 = tpu.dynamic_rotate %41 by %c1_i32_50 dim 1 : vector<8x256xf32>, i32 -> vector<8x256xf32>
    %c24_51 = arith.constant 24 : index
    %c0_52 = arith.constant 0 : index
    %55 = vector.load %arg2[%c24_51, %c0_52] : memref<72x256xf32, #tpu.memory_space<vmem>>, vector<8x256xf32>
    %56 = arith.mulf %54, %55 : vector<8x256xf32>
    %c24_53 = arith.constant 24 : index
    %c0_54 = arith.constant 0 : index
    %57 = vector.load %arg10[%c24_53, %c0_54] : memref<72x256xf32, #tpu.memory_space<vmem>>, vector<8x256xf32>
    tpu.vector_store %arg10[%c24_53, %c0_54], %56 {strides = array<i32>} : memref<72x256xf32, #tpu.memory_space<vmem>>, vector<8x256xf32>,
    %c32_55 = arith.constant 32 : index
    %c0_56 = arith.constant 0 : index
    %58 = vector.load %arg10[%c32_55, %c0_56] : memref<72x256xf32, #tpu.memory_space<vmem>>, vector<8x256xf32>
    tpu.vector_store %arg10[%c32_55, %c0_56], %41 {strides = array<i32>} : memref<72x256xf32, #tpu.memory_space<vmem>>, vector<8x256xf32>,
    %c255_i32_57 = arith.constant 255 : i32
    %59 = tpu.dynamic_rotate %41 by %c255_i32_57 dim 1 : vector<8x256xf32>, i32 -> vector<8x256xf32>
    %c40_58 = arith.constant 40 : index
    %c0_59 = arith.constant 0 : index
    %60 = vector.load %arg2[%c40_58, %c0_59] : memref<72x256xf32, #tpu.memory_space<vmem>>, vector<8x256xf32>
    %61 = arith.mulf %59, %60 : vector<8x256xf32>
    %c40_60 = arith.constant 40 : index
    %c0_61 = arith.constant 0 : index
    %62 = vector.load %arg10[%c40_60, %c0_61] : memref<72x256xf32, #tpu.memory_space<vmem>>, vector<8x256xf32>
    tpu.vector_store %arg10[%c40_60, %c0_61], %61 {strides = array<i32>} : memref<72x256xf32, #tpu.memory_space<vmem>>, vector<8x256xf32>,
    %c241_i32_62 = arith.constant 241 : i32
    %63 = tpu.dynamic_rotate %41 by %c241_i32_62 dim 1 : vector<8x256xf32>, i32 -> vector<8x256xf32>
    %c48_63 = arith.constant 48 : index
    %c0_64 = arith.constant 0 : index
    %64 = vector.load %arg2[%c48_63, %c0_64] : memref<72x256xf32, #tpu.memory_space<vmem>>, vector<8x256xf32>
    %65 = arith.mulf %63, %64 : vector<8x256xf32>
    %c48_65 = arith.constant 48 : index
    %c0_66 = arith.constant 0 : index
    %66 = vector.load %arg10[%c48_65, %c0_66] : memref<72x256xf32, #tpu.memory_space<vmem>>, vector<8x256xf32>
    tpu.vector_store %arg10[%c48_65, %c0_66], %65 {strides = array<i32>} : memref<72x256xf32, #tpu.memory_space<vmem>>, vector<8x256xf32>,
    %c240_i32_67 = arith.constant 240 : i32
    %67 = tpu.dynamic_rotate %41 by %c240_i32_67 dim 1 : vector<8x256xf32>, i32 -> vector<8x256xf32>
    %c56_68 = arith.constant 56 : index
    %c0_69 = arith.constant 0 : index
    %68 = vector.load %arg2[%c56_68, %c0_69] : memref<72x256xf32, #tpu.memory_space<vmem>>, vector<8x256xf32>
    %69 = arith.mulf %67, %68 : vector<8x256xf32>
    %c56_70 = arith.constant 56 : index
    %c0_71 = arith.constant 0 : index
    %70 = vector.load %arg10[%c56_70, %c0_71] : memref<72x256xf32, #tpu.memory_space<vmem>>, vector<8x256xf32>
    tpu.vector_store %arg10[%c56_70, %c0_71], %69 {strides = array<i32>} : memref<72x256xf32, #tpu.memory_space<vmem>>, vector<8x256xf32>,
    %c239_i32_72 = arith.constant 239 : i32
    %71 = tpu.dynamic_rotate %41 by %c239_i32_72 dim 1 : vector<8x256xf32>, i32 -> vector<8x256xf32>
    %c64_73 = arith.constant 64 : index
    %c0_74 = arith.constant 0 : index
    %72 = vector.load %arg2[%c64_73, %c0_74] : memref<72x256xf32, #tpu.memory_space<vmem>>, vector<8x256xf32>
    %73 = arith.mulf %71, %72 : vector<8x256xf32>
    %c64_75 = arith.constant 64 : index
    %c0_76 = arith.constant 0 : index
    %74 = vector.load %arg10[%c64_75, %c0_76] : memref<72x256xf32, #tpu.memory_space<vmem>>, vector<8x256xf32>
    tpu.vector_store %arg10[%c64_75, %c0_76], %73 {strides = array<i32>} : memref<72x256xf32, #tpu.memory_space<vmem>>, vector<8x256xf32>,
    %c0_77 = arith.constant 0 : index
    %c0_78 = arith.constant 0 : index
    %75 = vector.load %arg5[%c0_77, %c0_78] : memref<8x72xf32, #tpu.memory_space<vmem>>, vector<8x72xf32>
    %c0_79 = arith.constant 0 : index
    %c0_80 = arith.constant 0 : index
    %76 = vector.load %arg10[%c0_79, %c0_80] : memref<72x256xf32, #tpu.memory_space<vmem>>, vector<72x256xf32>
    %cst_81 = arith.constant dense<0.000000e+00> : vector<8x256xf32>
    %77 = tpu.matmul %75, %76, %cst_81 {dimension_numbers = #tpu.dot_dimension_numbers<[1], [0], [0], [1], [0, 0, 1, 1], [], []>} : vector<8x72xf32>, vector<72x256xf32>, vector<8x256xf32> -> vector<8x256xf32>
    %c0_82 = arith.constant 0 : index
    %c0_83 = arith.constant 0 : index
    %78 = vector.load %arg6[%c0_82, %c0_83] : memref<8x256xf32, #tpu.memory_space<vmem>>, vector<8x256xf32>
    %79 = arith.addf %77, %78 : vector<8x256xf32>
    %cst_84 = arith.constant dense<0.000000e+00> : vector<8xf32>
    %80 = vector.multi_reduction <add>, %79, %cst_84 [1] : vector<8x256xf32> to vector<8xf32>
    %81 = vector.shape_cast %80 : vector<8xf32> to vector<8x1xf32>
    %cst_85 = arith.constant 3.906250e-03 : f32
    %82 = vector.broadcast %cst_85 : f32 to vector<8x1xf32>
    %83 = arith.mulf %81, %82 : vector<8x1xf32>
    %c0_86 = arith.constant 0 : index
    %c0_87 = arith.constant 0 : index
    %84 = vector.load %arg7[%c0_86, %c0_87] : memref<8x2xf32, #tpu.memory_space<vmem>>, vector<8x2xf32>
    %85 = vector.broadcast %83 : vector<8x1xf32> to vector<8x2xf32>
    %86 = arith.mulf %85, %84 : vector<8x2xf32>
    %cst_88 = arith.constant dense<0.000000e+00> : vector<2xf32>
    %87 = vector.multi_reduction <add>, %86, %cst_88 [0] : vector<8x2xf32> to vector<2xf32>
    %88 = vector.shape_cast %87 : vector<2xf32> to vector<1x2xf32>
    %cst_89 = arith.constant 0.000000e+00 : f32
    %89 = vector.broadcast %cst_89 : f32 to vector<1x2xf32>
    %90 = arith.maximumf %88, %89 : vector<1x2xf32>
    %c0_90 = arith.constant 0 : index
    %c0_91 = arith.constant 0 : index
    %91 = vector.load %arg8[%c0_90, %c0_91] : memref<8x2xf32, #tpu.memory_space<vmem>>, vector<8x2xf32>
    %92 = vector.broadcast %90 : vector<1x2xf32> to vector<8x2xf32>
    %93 = arith.mulf %91, %92 : vector<8x2xf32>
    %cst_92 = arith.constant dense<0.000000e+00> : vector<8xf32>
    %94 = vector.multi_reduction <add>, %93, %cst_92 [1] : vector<8x2xf32> to vector<8xf32>
    %95 = vector.shape_cast %94 : vector<8xf32> to vector<8x1xf32>
    %96 = arith.negf %95 : vector<8x1xf32>
    %97 = math.exp %96 : vector<8x1xf32>
    %cst_93 = arith.constant 1.000000e+00 : f32
    %98 = vector.broadcast %cst_93 : f32 to vector<8x1xf32>
    %99 = arith.addf %98, %97 : vector<8x1xf32>
    %100 = arith.divf %98, %99 : vector<8x1xf32>
    %101 = vector.broadcast %100 : vector<8x1xf32> to vector<8x256xf32>
    %102 = arith.mulf %1, %101 : vector<8x256xf32>
    %c0_94 = arith.constant 0 : index
    %c0_95 = arith.constant 0 : index
    %c0_96 = arith.constant 0 : index
    %103 = vector.load %arg9[%c0_94, %c0_95, %c0_96] : memref<1x8x256xf32, #tpu.memory_space<vmem>>, vector<1x8x256xf32>
    %104 = vector.shape_cast %103 : vector<1x8x256xf32> to vector<8x256xf32>
    %105 = vector.shape_cast %102 : vector<8x256xf32> to vector<1x8x256xf32>
    tpu.vector_store %arg9[%c0_94, %c0_95, %c0_96], %105 {strides = array<i32>} : memref<1x8x256xf32, #tpu.memory_space<vmem>>, vector<1x8x256xf32>,
    return
  }
  func.func @transform_0(%arg0: i32) -> (i32, i32, i32) {
    %c0_i32 = arith.constant 0 : i32
    %c0_i32_0 = arith.constant 0 : i32
    %c0_i32_1 = arith.constant 0 : i32
    return %arg0, %c0_i32, %c0_i32_0 : i32, i32, i32
  }
  func.func @transform_1(%arg0: i32) -> (i32, i32) {
    %c0_i32 = arith.constant 0 : i32
    %c0_i32_0 = arith.constant 0 : i32
    %c0_i32_1 = arith.constant 0 : i32
    return %c0_i32, %c0_i32_0 : i32, i32
  }
  func.func @transform_2(%arg0: i32) -> (i32, i32) {
    %c0_i32 = arith.constant 0 : i32
    %c0_i32_0 = arith.constant 0 : i32
    %c0_i32_1 = arith.constant 0 : i32
    return %c0_i32, %c0_i32_0 : i32, i32
  }
  func.func @transform_3(%arg0: i32) -> (i32, i32) {
    %c0_i32 = arith.constant 0 : i32
    %c0_i32_0 = arith.constant 0 : i32
    %c0_i32_1 = arith.constant 0 : i32
    return %c0_i32, %c0_i32_0 : i32, i32
  }
  func.func @transform_4(%arg0: i32) -> (i32, i32) {
    %c0_i32 = arith.constant 0 : i32
    %c0_i32_0 = arith.constant 0 : i32
    %c0_i32_1 = arith.constant 0 : i32
    return %c0_i32, %c0_i32_0 : i32, i32
  }
  func.func @transform_5(%arg0: i32) -> (i32, i32) {
    %c0_i32 = arith.constant 0 : i32
    %c0_i32_0 = arith.constant 0 : i32
    %c0_i32_1 = arith.constant 0 : i32
    return %c0_i32, %c0_i32_0 : i32, i32
  }
  func.func @transform_6(%arg0: i32) -> (i32, i32) {
    %c0_i32 = arith.constant 0 : i32
    %c0_i32_0 = arith.constant 0 : i32
    %c0_i32_1 = arith.constant 0 : i32
    return %c0_i32, %c0_i32_0 : i32, i32
  }
  func.func @transform_7(%arg0: i32) -> (i32, i32) {
    %c0_i32 = arith.constant 0 : i32
    %c0_i32_0 = arith.constant 0 : i32
    %c0_i32_1 = arith.constant 0 : i32
    return %c0_i32, %c0_i32_0 : i32, i32
  }
  func.func @transform_8(%arg0: i32) -> (i32, i32, i32) {
    %c0_i32 = arith.constant 0 : i32
    %c0_i32_0 = arith.constant 0 : i32
    %c0_i32_1 = arith.constant 0 : i32
    return %arg0, %c0_i32, %c0_i32_0 : i32, i32, i32
  }
}

</mosaic_0001>

<llo_original>
// kernel: tpu_custom_call.1
$region0: #{tpu_custom_call.1}
  #allocation0 [shape = 'u32[]', space=smem, size = 0x4, offset = 0x4, fixed_abs, tag = 'smem constant byte address 0x4 - core index']
  #allocation1 [shape = 'u32[144,128]{1,0:T(1,128)}', space=vmem, size = 0x12000, scoped, tag = 'internal scratch']
  #allocation2 [shape = 'f32[72,256]{1,0:T(8,128)}', space=vmem, size = 0x12000, scoped, tag = 'scratch operand']
  %s0 = inlined_call_operand.hbm [shape: f32[2,8,256], index: 0, kind: input, shape index: {}]
  %s1 = inlined_call_operand.hbm [shape: f32[72,256], index: 1, kind: input, shape index: {}]
  %s2 = inlined_call_operand.hbm [shape: f32[8,72], index: 2, kind: input, shape index: {}]
  %s3 = inlined_call_operand.vmem [shape: f32[8,256], index: 3, kind: input, shape index: {}]
  %s4 = inlined_call_operand.hbm [shape: f32[8,72], index: 4, kind: input, shape index: {}]
  %s5 = inlined_call_operand.vmem [shape: f32[8,256], index: 5, kind: input, shape index: {}]
  %s6 = inlined_call_operand.vmem [shape: f32[8,2], index: 6, kind: input, shape index: {}]
  %s7 = inlined_call_operand.vmem [shape: f32[8,2], index: 7, kind: input, shape index: {}]
  %s8 = inlined_call_operand.hbm [shape: f32[2,8,256], index: 8, kind: output, shape index: {}]
  %s9 = sld [smem:[#allocation0]]
  $region81: #{tpu_custom_call.1} parent=0
    _
  %s11 = ssub.s32 1, %s9
  %s12 = scalar_select 0, %s11, %s9
  $region1: #{tpu_custom_call.1} parent=0
    #allocation3 [shape = 'u8[16384]{0}', space=vmem, size = 0x4000, scoped, tag = 'input window, operand 0']
    #allocation4 [shape = 's32[2]{0}', space=sflag, size = 0x8, scoped, tag = 'scoped memory for tpu_custom_call.1']
    #allocation5 [shape = 's32[2]{0}', space=sflag, size = 0x8, scoped, tag = 'scoped memory for tpu_custom_call.1']
    #allocation6 [shape = 'u8[73728]{0}', space=vmem, size = 0x12000, scoped, tag = 'input window, operand 1, single buffered']
    #allocation7 [shape = 's32[1]{0}', space=sflag, size = 0x4, scoped, tag = 'scoped memory for tpu_custom_call.1']
    #allocation8 [shape = 'u8[4096]{0}', space=vmem, size = 0x1000, scoped, tag = 'input window, operand 2, single buffered']
    #allocation9 [shape = 'u8[4096]{0}', space=vmem, size = 0x1000, scoped, tag = 'input window, operand 4, single buffered']
    #allocation10 [shape = 's32[1]{0}', space=sflag, size = 0x4, scoped, tag = 'scoped memory for tpu_custom_call.1']
    #allocation11 [shape = 'u8[16384]{0}', space=vmem, size = 0x4000, scoped, tag = 'output window, operand 0']
    %13 = vsyncpa [#allocation4], 0
    %s14 = scalar_lea.sflag [#allocation4], 1
    %15 = vsyncpa %s14, 0
    %16 = vsyncpa [#allocation7], 0
    %17 = vsyncpa [#allocation10], 0
    %18 = vsyncpa [#allocation5], 0
    %s19 = scalar_lea.sflag [#allocation5], 1
    %20 = vsyncpa %s19, 0
    loop: start=0, step=1, limit=4
    $region2: #{tpu_custom_call.1} parent=1 // loop_pre_header
      _
    $region3: #{tpu_custom_call.1} parent=1 // loop_header
      %s22 = sphi 0, %s26
      %p23 = scmp.ge.s32.totalorder %s22, 4
      %s32 = sphi 0, %s34
      %s35 = sphi 0, %s32
      %s36 = sphi 0, %s35
      %s52 = sphi 0, %s36
      %s56 = sphi 0, %s56
      %s58 = sphi 0, %s56
      %s59 = sphi 0, %s58
      %s73 = sphi 0, %s59
      %s77 = sphi 0, %s77
      %s79 = sphi 0, %s77
      %s80 = sphi 0, %s79
      %s94 = sphi 0, %s80
      %s98 = sphi 0, %s98
      %s100 = sphi 0, %s98
      %s101 = sphi 0, %s100
      %s115 = sphi 0, %s101
      %s119 = sphi 0, %s119
      %s121 = sphi 0, %s119
      %s122 = sphi 0, %s121
      %s136 = sphi 0, %s122
      %s140 = sphi 0, %s140
      %s142 = sphi 0, %s140
      %s143 = sphi 0, %s142
      %s157 = sphi 0, %s143
      %s161 = sphi 0, %s161
      %s163 = sphi 0, %s161
      %s164 = sphi 0, %s163
      %s178 = sphi 0, %s164
      %s182 = sphi 0, %s182
      %s184 = sphi 0, %s182
      %s185 = sphi 0, %s184
      %s199 = sphi 0, %s185
      %s205 = sphi 0, %s207
      %s208 = sphi 0, %s205
      %s209 = sphi 0, %s208
      %s225 = sphi 0, %s209
    $region4: #{tpu_custom_call.1} parent=1 // loop_header_branch
      %25 = sbr.rel (%p23) target = $region8
    $region5: #{tpu_custom_call.1} parent=1 // loop_body
      %s27 = ssub.s32 %s22, 1
      %s28 = ssub.s32 %s22, 2
      %s29 = sadd.s32 %s22, 1
      %s30 = ssub.s32 %s22, %s29
      %p31 = scmp.eq.s32.totalorder %s30, 0
      %s33 = sadd.s32 %s32, 1
      %s34 = scalar_select %p31, %s32, %s33
      %p37 = pneg %p31
      %p38 = scmp.eq.s32.totalorder %s22, 1
      %p39 = por %p37, %p38
      %p40 = scmp.ne.s32.totalorder %s32, %s35
      %p41 = scmp.eq.s32.totalorder %s22, 0
      %p42 = por %p40, %p41
      %p43 = scmp.ne.s32.totalorder %s32, %s35
      %p44 = scmp.eq.s32.totalorder %s27, 1
      %p45 = por %p43, %p44
      %p46 = scmp.ne.s32.totalorder %s35, %s36
      %p47 = scmp.eq.s32.totalorder %s27, 0
      %p48 = por %p46, %p47
      %p49 = scmp.ne.s32.totalorder %s35, %s36
      %p50 = scmp.eq.s32.totalorder %s28, 1
      %p51 = por %p49, %p50
      %p53 = scmp.ne.s32.totalorder %s36, %s52
      %p54 = scmp.eq.s32.totalorder %s28, 0
      %p55 = por %p53, %p54
      %s57 = sadd.s32 %s56, 1
      %p60 = scmp.eq.s32.totalorder %s22, 1
      %p61 = scmp.ne.s32.totalorder %s56, %s58
      %p62 = scmp.eq.s32.totalorder %s22, 0
      %p63 = por %p61, %p62
      %p64 = scmp.ne.s32.totalorder %s56, %s58
      %p65 = scmp.eq.s32.totalorder %s27, 1
      %p66 = por %p64, %p65
      %p67 = scmp.ne.s32.totalorder %s58, %s59
      %p68 = scmp.eq.s32.totalorder %s27, 0
      %p69 = por %p67, %p68
      %p70 = scmp.ne.s32.totalorder %s58, %s59
      %p71 = scmp.eq.s32.totalorder %s28, 1
      %p72 = por %p70, %p71
      %p74 = scmp.ne.s32.totalorder %s59, %s73
      %p75 = scmp.eq.s32.totalorder %s28, 0
      %p76 = por %p74, %p75
      %s78 = sadd.s32 %s77, 1
      %p81 = scmp.eq.s32.totalorder %s22, 1
      %p82 = scmp.ne.s32.totalorder %s77, %s79
      %p83 = scmp.eq.s32.totalorder %s22, 0
      %p84 = por %p82, %p83
      %p85 = scmp.ne.s32.totalorder %s77, %s79
      %p86 = scmp.eq.s32.totalorder %s27, 1
      %p87 = por %p85, %p86
      %p88 = scmp.ne.s32.totalorder %s79, %s80
      %p89 = scmp.eq.s32.totalorder %s27, 0
      %p90 = por %p88, %p89
      %p91 = scmp.ne.s32.totalorder %s79, %s80
      %p92 = scmp.eq.s32.totalorder %s28, 1
      %p93 = por %p91, %p92
      %p95 = scmp.ne.s32.totalorder %s80, %s94
      %p96 = scmp.eq.s32.totalorder %s28, 0
      %p97 = por %p95, %p96
      %s99 = sadd.s32 %s98, 1
      %p102 = scmp.eq.s32.totalorder %s22, 1
      %p103 = scmp.ne.s32.totalorder %s98, %s100
      %p104 = scmp.eq.s32.totalorder %s22, 0
      %p105 = por %p103, %p104
      %p106 = scmp.ne.s32.totalorder %s98, %s100
      %p107 = scmp.eq.s32.totalorder %s27, 1
      %p108 = por %p106, %p107
      %p109 = scmp.ne.s32.totalorder %s100, %s101
      %p110 = scmp.eq.s32.totalorder %s27, 0
      %p111 = por %p109, %p110
      %p112 = scmp.ne.s32.totalorder %s100, %s101
      %p113 = scmp.eq.s32.totalorder %s28, 1
      %p114 = por %p112, %p113
      %p116 = scmp.ne.s32.totalorder %s101, %s115
      %p117 = scmp.eq.s32.totalorder %s28, 0
      %p118 = por %p116, %p117
      %s120 = sadd.s32 %s119, 1
      %p123 = scmp.eq.s32.totalorder %s22, 1
      %p124 = scmp.ne.s32.totalorder %s119, %s121
      %p125 = scmp.eq.s32.totalorder %s22, 0
      %p126 = por %p124, %p125
      %p127 = scmp.ne.s32.totalorder %s119, %s121
      %p128 = scmp.eq.s32.totalorder %s27, 1
      %p129 = por %p127, %p128
      %p130 = scmp.ne.s32.totalorder %s121, %s122
      %p131 = scmp.eq.s32.totalorder %s27, 0
      %p132 = por %p130, %p131
      %p133 = scmp.ne.s32.totalorder %s121, %s122
      %p134 = scmp.eq.s32.totalorder %s28, 1
      %p135 = por %p133, %p134
      %p137 = scmp.ne.s32.totalorder %s122, %s136
      %p138 = scmp.eq.s32.totalorder %s28, 0
      %p139 = por %p137, %p138
      %s141 = sadd.s32 %s140, 1
      %p144 = scmp.eq.s32.totalorder %s22, 1
      %p145 = scmp.ne.s32.totalorder %s140, %s142
      %p146 = scmp.eq.s32.totalorder %s22, 0
      %p147 = por %p145, %p146
      %p148 = scmp.ne.s32.totalorder %s140, %s142
      %p149 = scmp.eq.s32.totalorder %s27, 1
      %p150 = por %p148, %p149
      %p151 = scmp.ne.s32.totalorder %s142, %s143
      %p152 = scmp.eq.s32.totalorder %s27, 0
      %p153 = por %p151, %p152
      %p154 = scmp.ne.s32.totalorder %s142, %s143
      %p155 = scmp.eq.s32.totalorder %s28, 1
      %p156 = por %p154, %p155
      %p158 = scmp.ne.s32.totalorder %s143, %s157
      %p159 = scmp.eq.s32.totalorder %s28, 0
      %p160 = por %p158, %p159
      %s162 = sadd.s32 %s161, 1
      %p165 = scmp.eq.s32.totalorder %s22, 1
      %p166 = scmp.ne.s32.totalorder %s161, %s163
      %p167 = scmp.eq.s32.totalorder %s22, 0
      %p168 = por %p166, %p167
      %p169 = scmp.ne.s32.totalorder %s161, %s163
      %p170 = scmp.eq.s32.totalorder %s27, 1
      %p171 = por %p169, %p170
      %p172 = scmp.ne.s32.totalorder %s163, %s164
      %p173 = scmp.eq.s32.totalorder %s27, 0
      %p174 = por %p172, %p173
      %p175 = scmp.ne.s32.totalorder %s163, %s164
      %p176 = scmp.eq.s32.totalorder %s28, 1
      %p177 = por %p175, %p176
      %p179 = scmp.ne.s32.totalorder %s164, %s178
      %p180 = scmp.eq.s32.totalorder %s28, 0
      %p181 = por %p179, %p180
      %s183 = sadd.s32 %s182, 1
      %p186 = scmp.eq.s32.totalorder %s22, 1
      %p187 = scmp.ne.s32.totalorder %s182, %s184
      %p188 = scmp.eq.s32.totalorder %s22, 0
      %p189 = por %p187, %p188
      %p190 = scmp.ne.s32.totalorder %s182, %s184
      %p191 = scmp.eq.s32.totalorder %s27, 1
      %p192 = por %p190, %p191
      %p193 = scmp.ne.s32.totalorder %s184, %s185
      %p194 = scmp.eq.s32.totalorder %s27, 0
      %p195 = por %p193, %p194
      %p196 = scmp.ne.s32.totalorder %s184, %s185
      %p197 = scmp.eq.s32.totalorder %s28, 1
      %p198 = por %p196, %p197
      %p200 = scmp.ne.s32.totalorder %s185, %s199
      %p201 = scmp.eq.s32.totalorder %s28, 0
      %p202 = por %p200, %p201
      %s203 = ssub.s32 %s22, %s29
      %p204 = scmp.eq.s32.totalorder %s203, 0
      %s206 = sadd.s32 %s205, 1
      %s207 = scalar_select %p204, %s205, %s206
      %p210 = pneg %p204
      %p211 = scmp.eq.s32.totalorder %s22, 1
      %p212 = por %p210, %p211
      %p213 = scmp.ne.s32.totalorder %s205, %s208
      %p214 = scmp.eq.s32.totalorder %s22, 0
      %p215 = por %p213, %p214
      %p216 = scmp.ne.s32.totalorder %s205, %s208
      %p217 = scmp.eq.s32.totalorder %s27, 1
      %p218 = por %p216, %p217
      %p219 = scmp.ne.s32.totalorder %s208, %s209
      %p220 = scmp.eq.s32.totalorder %s27, 0
      %p221 = por %p219, %p220
      %p222 = scmp.ne.s32.totalorder %s208, %s209
      %p223 = scmp.eq.s32.totalorder %s28, 1
      %p224 = por %p222, %p223
      %p226 = scmp.ne.s32.totalorder %s209, %s225
      %p227 = scmp.eq.s32.totalorder %s28, 0
      %p228 = por %p226, %p227
      %p229 = scmp.le.s32.totalorder 1, %s22
      %p230 = scmp.lt.s32.totalorder %s22, 3
      %p231 = pnand %p229, %p230
      %p232 = pneg %p231
      // Predicated region
      $region9: #{tpu_custom_call.1} parent=5 // pred_check
        _
      $region10: #{tpu_custom_call.1} parent=5 // pred_check_branch
        %234 = sbr.rel (%p231) target = $region12
      $region11: #{tpu_custom_call.1} parent=5 // pred_region
        %s235 = ssub.s32 %s22, 1
        // Predicated region
        $region13: #{tpu_custom_call.1} parent=11 // pred_check
          %p236 = pneg %p69
        $region14: #{tpu_custom_call.1} parent=11 // pred_check_branch
          %238 = sbr.rel (%p236) target = $region16
        $region15: #{tpu_custom_call.1} parent=11 // pred_region
          %s240 = ssub.s32 2304, 2304
          %241 = vsyncadd [#allocation7], %s240
          %s242 = sshll.u32 [#allocation6], 4
          %s243 = int_to_ptr.vmem [resolvable:$true] %s242
          %248 = dma.hbm_to_vmem [thread:$0]  %s1, 2304, %s243, [#allocation7], 256, 256, 16
        $region16: #{tpu_custom_call.1} parent=11 // pred_fallthru
          _
        // Predicated region
        $region17: #{tpu_custom_call.1} parent=11 // pred_check
          %p249 = pneg %p90
        $region18: #{tpu_custom_call.1} parent=11 // pred_check_branch
          %251 = sbr.rel (%p249) target = $region20
        $region19: #{tpu_custom_call.1} parent=11 // pred_region
          %s253 = ssub.s32 128, 128
          %254 = vsyncadd [#allocation7], %s253
          %s256 = sshll.u32 [#allocation8], 4
          %s257 = int_to_ptr.vmem [resolvable:$true] %s256
          %259 = dma.hbm_to_vmem [thread:$0]  %s2, 128, %s257, [#allocation7]
        $region20: #{tpu_custom_call.1} parent=11 // pred_fallthru
          _
        // Predicated region
        $region21: #{tpu_custom_call.1} parent=11 // pred_check
          %p260 = pneg %p111
        $region22: #{tpu_custom_call.1} parent=11 // pred_check_branch
          %262 = sbr.rel (%p260) target = $region24
        $region23: #{tpu_custom_call.1} parent=11 // pred_region
          _
        $region24: #{tpu_custom_call.1} parent=11 // pred_fallthru
          _
        // Predicated region
        $region25: #{tpu_custom_call.1} parent=11 // pred_check
          %p263 = pneg %p132
        $region26: #{tpu_custom_call.1} parent=11 // pred_check_branch
          %265 = sbr.rel (%p263) target = $region28
        $region27: #{tpu_custom_call.1} parent=11 // pred_region
          %s267 = ssub.s32 128, 128
          %268 = vsyncadd [#allocation10], %s267
          %s270 = sshll.u32 [#allocation9], 4
          %s271 = int_to_ptr.vmem [resolvable:$true] %s270
          %273 = dma.hbm_to_vmem [thread:$0]  %s4, 128, %s271, [#allocation10]
        $region28: #{tpu_custom_call.1} parent=11 // pred_fallthru
          _
        // Predicated region
        $region29: #{tpu_custom_call.1} parent=11 // pred_check
          %p274 = pneg %p153
        $region30: #{tpu_custom_call.1} parent=11 // pred_check_branch
          %276 = sbr.rel (%p274) target = $region32
        $region31: #{tpu_custom_call.1} parent=11 // pred_region
          _
        $region32: #{tpu_custom_call.1} parent=11 // pred_fallthru
          _
        // Predicated region
        $region33: #{tpu_custom_call.1} parent=11 // pred_check
          %p277 = pneg %p174
        $region34: #{tpu_custom_call.1} parent=11 // pred_check_branch
          %279 = sbr.rel (%p277) target = $region36
        $region35: #{tpu_custom_call.1} parent=11 // pred_region
          _
        $region36: #{tpu_custom_call.1} parent=11 // pred_fallthru
          _
        // Predicated region
        $region37: #{tpu_custom_call.1} parent=11 // pred_check
          %p280 = pneg %p195
        $region38: #{tpu_custom_call.1} parent=11 // pred_check_branch
          %282 = sbr.rel (%p280) target = $region40
        $region39: #{tpu_custom_call.1} parent=11 // pred_region
          _
        $region40: #{tpu_custom_call.1} parent=11 // pred_fallthru
          _
      $region12: #{tpu_custom_call.1} parent=5 // pred_fallthru
        _
      %p283 = scmp.lt.s32.totalorder %s22, 2
      // Predicated region
      $region41: #{tpu_custom_call.1} parent=5 // pred_check
        %p284 = pneg %p283
      $region42: #{tpu_custom_call.1} parent=5 // pred_check_branch
        %286 = sbr.rel (%p284) target = $region44
      $region43: #{tpu_custom_call.1} parent=5 // pred_region
        // Predicated region
        $region45: #{tpu_custom_call.1} parent=43 // pred_check
          %p287 = pneg %p42
        $region46: #{tpu_custom_call.1} parent=43 // pred_check_branch
          %289 = sbr.rel (%p287) target = $region48
        $region47: #{tpu_custom_call.1} parent=43 // pred_region
          %s290 = sand.u32 %s32, 1
          %s291 = scalar_lea.sflag [#allocation4], %s290
          %s292 = sand.u32 %s32, 1
          %s293 = smul.addr %s292, 16
          %s294 = scalar_lea.vmem [#allocation3], %s293
          %s296 = ssub.s32 256, 256
          %297 = vsyncadd %s291, %s296
          %s298 = smul.addr %s22, 2
          %s299 = smul.addr %s298, 128
          %s300 = scalar_lea.hbm %s0, %s299
          %s302 = sshll.u32 %s294, 4
          %s303 = int_to_ptr.vmem [resolvable:$true] %s302
          %305 = dma.hbm_to_vmem [thread:$0]  %s300, 256, %s303, %s291
        $region48: #{tpu_custom_call.1} parent=43 // pred_fallthru
          _
      $region44: #{tpu_custom_call.1} parent=5 // pred_fallthru
        _
      %p306 = scmp.le.s32.totalorder 1, %s22
      %p307 = scmp.lt.s32.totalorder %s22, 3
      %p308 = pnand %p306, %p307
      %p309 = pneg %p308
      // Predicated region
      $region49: #{tpu_custom_call.1} parent=5 // pred_check
        _
      $region50: #{tpu_custom_call.1} parent=5 // pred_check_branch
        %311 = sbr.rel (%p308) target = $region52
      $region51: #{tpu_custom_call.1} parent=5 // pred_region
        %s312 = ssub.s32 %s22, 1
        %s313 = sand.u32 %s35, 1
        %s314 = scalar_lea.sflag [#allocation4], %s313
        %s315 = sand.u32 %s35, 1
        %s316 = smul.addr %s315, 16
        %s317 = scalar_lea.vmem [#allocation3], %s316
        // Predicated region
        $region53: #{tpu_custom_call.1} parent=51 // pred_check
          %p318 = pneg %p48
        $region54: #{tpu_custom_call.1} parent=51 // pred_check_branch
          %320 = sbr.rel (%p318) target = $region56
        $region55: #{tpu_custom_call.1} parent=51 // pred_region
          %321 = dma.done %s314, 256
        $region56: #{tpu_custom_call.1} parent=51 // pred_fallthru
          _
        // Predicated region
        $region57: #{tpu_custom_call.1} parent=51 // pred_check
          %p322 = pneg %p69
        $region58: #{tpu_custom_call.1} parent=51 // pred_check_branch
          %324 = sbr.rel (%p322) target = $region60
        $region59: #{tpu_custom_call.1} parent=51 // pred_region
          %325 = dma.done [#allocation7], 2304
        $region60: #{tpu_custom_call.1} parent=51 // pred_fallthru
          _
        // Predicated region
        $region61: #{tpu_custom_call.1} parent=51 // pred_check
          %p326 = pneg %p90
        $region62: #{tpu_custom_call.1} parent=51 // pred_check_branch
          %328 = sbr.rel (%p326) target = $region64
        $region63: #{tpu_custom_call.1} parent=51 // pred_region
          %329 = dma.done [#allocation7], 128
        $region64: #{tpu_custom_call.1} parent=51 // pred_fallthru
          _
        // Predicated region
        $region65: #{tpu_custom_call.1} parent=51 // pred_check
          %p330 = pneg %p132
        $region66: #{tpu_custom_call.1} parent=51 // pred_check_branch
          %332 = sbr.rel (%p330) target = $region68
        $region67: #{tpu_custom_call.1} parent=51 // pred_region
          %333 = dma.done [#allocation10], 128
        $region68: #{tpu_custom_call.1} parent=51 // pred_fallthru
          _
        %s334 = sand.u32 %s35, 1
        %s335 = scalar_lea.sflag [#allocation4], %s334
        %s336 = sand.u32 %s35, 1
        %s337 = smul.addr %s336, 16
        %s338 = scalar_lea.vmem [#allocation3], %s337
        %p339 = pneg %p48
        %p340 = pneg %p45
        %p341 = pneg %p69
        %p342 = pneg %p66
        %p343 = pneg %p90
        %p344 = pneg %p87
        %p345 = pneg %p111
        %p346 = pneg %p108
        %p347 = pneg %p132
        %p348 = pneg %p129
        %p349 = pneg %p153
        %p350 = pneg %p150
        %p351 = pneg %p174
        %p352 = pneg %p171
        %p353 = pneg %p195
        %p354 = pneg %p192
        %p355 = pneg %p221
        %p356 = pneg %p218
        %s357 = sand.u32 %s208, 1
        %s358 = scalar_lea.sflag [#allocation5], %s357
        %s359 = sand.u32 %s208, 1
        %s360 = smul.addr %s359, 16
        %s361 = scalar_lea.vmem [#allocation11], %s360
        %v362 = vld [vmem:[%s317] sm:$0xff]
        %v363 = vld [vmem:[%s317 + $0x8] sm:$0xff]
        %364 = vrot.lane.b32.xlu0 %v362, 17
        %v365 = vpop.permute.xlu0 %364
        %366 = vrot.lane.b32.xlu0 %v363, 17
        %v367 = vpop.permute.xlu0 %366
        %v368 = vlaneseq
        %v369 = vand.u32 %v368, 127
        %vm370 = vcmp.lt.s32.totalorder %v369, 17
        %v371 = vsel %vm370, %v365, %v367
        %v372 = vsel %vm370, %v367, %v365
        %v373 = vld [vmem:[#allocation6] sm:$0xff]
        %v374 = vld [vmem:[#allocation6 + $0x8] sm:$0xff]
        %v375 = vmul.f32 %v372, %v373
        %v376 = vmul.f32 %v371, %v374
        %377 = vst [vmem:[#allocation2] sm:$0xff] %v375
        %378 = vst [vmem:[#allocation2 + $0x8] sm:$0xff] %v376
        %379 = vrot.lane.b32.xlu0 %v362, 16
        %v380 = vpop.permute.xlu0 %379
        %381 = vrot.lane.b32.xlu0 %v363, 16
        %v382 = vpop.permute.xlu0 %381
        %vm383 = vcmp.lt.s32.totalorder %v369, 16
        %v384 = vsel %vm383, %v380, %v382
        %v385 = vsel %vm383, %v382, %v380
        %v386 = vld [vmem:[#allocation6 + $0x10] sm:$0xff]
        %v387 = vld [vmem:[#allocation6 + $0x18] sm:$0xff]
        %v388 = vmul.f32 %v385, %v386
        %v389 = vmul.f32 %v384, %v387
        %390 = vst [vmem:[#allocation2 + $0x10] sm:$0xff] %v388
        %391 = vst [vmem:[#allocation2 + $0x18] sm:$0xff] %v389
        %392 = vrot.lane.b32.xlu0 %v362, 15
        %v393 = vpop.permute.xlu0 %392
        %394 = vrot.lane.b32.xlu0 %v363, 15
        %v395 = vpop.permute.xlu0 %394
        %vm396 = vcmp.lt.s32.totalorder %v369, 15
        %v397 = vsel %vm396, %v393, %v395
        %v398 = vsel %vm396, %v395, %v393
        %v399 = vld [vmem:[#allocation6 + $0x20] sm:$0xff]
        %v400 = vld [vmem:[#allocation6 + $0x28] sm:$0xff]
        %v401 = vmul.f32 %v398, %v399
        %v402 = vmul.f32 %v397, %v400
        %403 = vst [vmem:[#allocation2 + $0x20] sm:$0xff] %v401
        %404 = vst [vmem:[#allocation2 + $0x28] sm:$0xff] %v402
        %405 = vrot.lane.b32.xlu0 %v362, 1
        %v406 = vpop.permute.xlu0 %405
        %407 = vrot.lane.b32.xlu0 %v363, 1
        %v408 = vpop.permute.xlu0 %407
        %vm409 = vcmp.lt.s32.totalorder %v369, 1
        %v410 = vsel %vm409, %v406, %v408
        %v411 = vsel %vm409, %v408, %v406
        %v412 = vld [vmem:[#allocation6 + $0x30] sm:$0xff]
        %v413 = vld [vmem:[#allocation6 + $0x38] sm:$0xff]
        %v414 = vmul.f32 %v411, %v412
        %v415 = vmul.f32 %v410, %v413
        %416 = vst [vmem:[#allocation2 + $0x30] sm:$0xff] %v414
        %417 = vst [vmem:[#allocation2 + $0x38] sm:$0xff] %v415
        %418 = vst [vmem:[#allocation2 + $0x40] sm:$0xff] %v362
        %419 = vst [vmem:[#allocation2 + $0x48] sm:$0xff] %v363
        %420 = vrot.lane.b32.xlu0 %v362, 127
        %v421 = vpop.permute.xlu0 %420
        %422 = vrot.lane.b32.xlu0 %v363, 127
        %v423 = vpop.permute.xlu0 %422
        %vm424 = vcmp.lt.s32.totalorder %v369, 127
        %v425 = vsel %vm424, %v421, %v423
        %v426 = vsel %vm424, %v423, %v421
        %v427 = vld [vmem:[#allocation6 + $0x50] sm:$0xff]
        %v428 = vld [vmem:[#allocation6 + $0x58] sm:$0xff]
        %v429 = vmul.f32 %v425, %v427
        %v430 = vmul.f32 %v426, %v428
        %431 = vst [vmem:[#allocation2 + $0x50] sm:$0xff] %v429
        %432 = vst [vmem:[#allocation2 + $0x58] sm:$0xff] %v430
        %433 = vrot.lane.b32.xlu0 %v362, 113
        %v434 = vpop.permute.xlu0 %433
        %435 = vrot.lane.b32.xlu0 %v363, 113
        %v436 = vpop.permute.xlu0 %435
        %vm437 = vcmp.lt.s32.totalorder %v369, 113
        %v438 = vsel %vm437, %v434, %v436
        %v439 = vsel %vm437, %v436, %v434
        %v440 = vld [vmem:[#allocation6 + $0x60] sm:$0xff]
        %v441 = vld [vmem:[#allocation6 + $0x68] sm:$0xff]
        %v442 = vmul.f32 %v438, %v440
        %v443 = vmul.f32 %v439, %v441
        %444 = vst [vmem:[#allocation2 + $0x60] sm:$0xff] %v442
        %445 = vst [vmem:[#allocation2 + $0x68] sm:$0xff] %v443
        %446 = vrot.lane.b32.xlu0 %v362, 112
        %v447 = vpop.permute.xlu0 %446
        %448 = vrot.lane.b32.xlu0 %v363, 112
        %v449 = vpop.permute.xlu0 %448
        %vm450 = vcmp.lt.s32.totalorder %v369, 112
        %v451 = vsel %vm450, %v447, %v449
        %v452 = vsel %vm450, %v449, %v447
        %v453 = vld [vmem:[#allocation6 + $0x70] sm:$0xff]
        %v454 = vld [vmem:[#allocation6 + $0x78] sm:$0xff]
        %v455 = vmul.f32 %v451, %v453
        %v456 = vmul.f32 %v452, %v454
        %457 = vst [vmem:[#allocation2 + $0x70] sm:$0xff] %v455
        %458 = vst [vmem:[#allocation2 + $0x78] sm:$0xff] %v456
        %459 = vrot.lane.b32.xlu0 %v362, 111
        %v460 = vpop.permute.xlu0 %459
        %461 = vrot.lane.b32.xlu0 %v363, 111
        %v462 = vpop.permute.xlu0 %461
        %vm463 = vcmp.lt.s32.totalorder %v369, 111
        %v464 = vsel %vm463, %v460, %v462
        %v465 = vsel %vm463, %v462, %v460
        %v466 = vld [vmem:[#allocation6 + $0x80] sm:$0xff]
        %v467 = vld [vmem:[#allocation6 + $0x88] sm:$0xff]
        %v468 = vmul.f32 %v464, %v466
        %v469 = vmul.f32 %v465, %v467
        %470 = vst [vmem:[#allocation2 + $0x80] sm:$0xff] %v468
        %471 = vst [vmem:[#allocation2 + $0x88] sm:$0xff] %v469
        %v472 = vld [vmem:[#allocation8] sm:$0xff]
        %v473 = vld [vmem:[#allocation2] sm:$0xff]
        %v474 = vld [vmem:[#allocation2 + $0x8] sm:$0xff]
        %v475 = vld [vmem:[#allocation2 + $0x10] sm:$0xff]
        %v476 = vld [vmem:[#allocation2 + $0x18] sm:$0xff]
        %v477 = vld [vmem:[#allocation2 + $0x20] sm:$0xff]
        %v478 = vld [vmem:[#allocation2 + $0x28] sm:$0xff]
        %v479 = vld [vmem:[#allocation2 + $0x30] sm:$0xff]
        %v480 = vld [vmem:[#allocation2 + $0x38] sm:$0xff]
        %v481 = vld [vmem:[#allocation2 + $0x40] sm:$0xff]
        %v482 = vld [vmem:[#allocation2 + $0x48] sm:$0xff]
        %v483 = vld [vmem:[#allocation2 + $0x50] sm:$0xff]
        %v484 = vld [vmem:[#allocation2 + $0x58] sm:$0xff]
        %v485 = vld [vmem:[#allocation2 + $0x60] sm:$0xff]
        %v486 = vld [vmem:[#allocation2 + $0x68] sm:$0xff]
        %v487 = vld [vmem:[#allocation2 + $0x70] sm:$0xff]
        %v488 = vld [vmem:[#allocation2 + $0x78] sm:$0xff]
        %v489 = vld [vmem:[#allocation2 + $0x80] sm:$0xff]
        %v490 = vld [vmem:[#allocation2 + $0x88] sm:$0xff]
        %v491 = vld [vmem:[%s3] sm:$0xff]
        %v492 = vld [vmem:[%s3 + $0x8] sm:$0xff]
        %vm493 = vcmask 588800
        %v495 = vsel %vm493, %v472, 0
        %497 = vmatprep.subr.mxu0 %v474
        %498 = vmatpush1.msra.mxu0 %v473
        %499 = vmatprep.subr.mxu0 %v476
        %500 = vmatpush1.msra.mxu0 %v475
        %501 = vmatprep.subr.mxu0 %v478
        %502 = vmatpush1.msra.mxu0 %v477
        %503 = vmatprep.subr.mxu0 %v480
        %504 = vmatpush1.msra.mxu0 %v479
        %505 = vmatprep.subr.mxu0 %v482
        %506 = vmatpush1.msra.mxu0 %v481
        %507 = vmatprep.subr.mxu0 %v484
        %508 = vmatpush1.msra.mxu0 %v483
        %509 = vmatprep.subr.mxu0 %v486
        %510 = vmatpush1.msra.mxu0 %v485
        %511 = vmatprep.subr.mxu0 %v488
        %512 = vmatpush1.msra.mxu0 %v487
        %513 = vmatprep.subr.mxu0 %v490
        %514 = vmatpush1.msra.mxu0 %v489
        %515 = vmatprep.subr.mxu0 0.0
        %516 = vmatpush1.msra.mxu0 0.0
        %517 = vmatprep.subr.mxu0 0.0
        %518 = vmatpush1.msra.mxu0 0.0
        %519 = vmatprep.subr.mxu0 0.0
        %520 = vmatpush1.msra.mxu0 0.0
        %521 = vmatprep.subr.mxu0 0.0
        %522 = vmatpush1.msra.mxu0 0.0
        %523 = vmatprep.subr.mxu0 0.0
        %524 = vmatpush1.msra.mxu0 0.0
        %525 = vmatprep.subr.mxu0 0.0
        %526 = vmatpush1.msra.mxu0 0.0
        %527 = vmatprep.subr.mxu0 0.0
        %528 = vmatpush1.msra.mxu0 0.0
        %529 = vmatprep.subr.mxu0 0.0
        %530 = vmatpush1.msra.mxu0 0.0
        %531 = vmatprep.subr.mxu0 0.0
        %532 = vmatpush1.msra.mxu0 0.0
        %533 = vmatprep.subr.mxu0 0.0
        %534 = vmatpush1.msra.mxu0 0.0
        %535 = vmatprep.subr.mxu0 0.0
        %536 = vmatpush1.msra.mxu0 0.0
        %537 = vmatprep.subr.mxu0 0.0
        %538 = vmatpush1.msra.mxu0 0.0
        %539 = vmatprep.subr.mxu0 0.0
        %540 = vmatpush1.msra.mxu0 0.0
        %541 = vmatprep.subr.mxu0 0.0
        %542 = vmatpush1.msra.mxu0 0.0
        %543 = vmatprep.subr.mxu0 0.0
        %544 = vmatpush1.msra.mxu0 0.0
        %545 = vmatprep.subr.mxu0 0.0
        %546 = vmatpush1.msra.mxu0 0.0
        %547 = vmatprep.subr.mxu0 0.0
        %548 = vmatpush1.msra.mxu0 0.0
        %549 = vmatprep.subr.mxu0 0.0
        %550 = vmatpush1.msra.mxu0 0.0
        %551 = vmatprep.subr.mxu0 0.0
        %552 = vmatpush1.msra.mxu0 0.0
        %553 = vmatprep.subr.mxu0 0.0
        %554 = vmatpush1.msra.mxu0 0.0
        %555 = vmatprep.subr.mxu0 0.0
        %556 = vmatpush1.msra.mxu0 0.0
        %557 = vmatprep.subr.mxu0 0.0
        %558 = vmatpush1.msra.mxu0 0.0
        %559 = vmatprep.subr.mxu0 0.0
        %560 = vmatpush1.msra.mxu0 0.0
        %561 = vmatprep.mubr.f32.mxu0 0.0
        %562 = vmatmul.mubr.f32.gmra.mrb[0].mxu0 %v495
        %v563 = vpop.f32.mrb[0].mxu0
        %v564 = vadd.f32 %v491, %v563
        %v565 = vpop.f32.mrb[0].mxu0
        %v566 = vadd.f32 %v492, %v565
        %567 = vdwg.mxu0
        %v568 = vmax.f32 %v564, 0.0
        %v569 = vmax.f32 %v566, 0.0
        %570 = vrot.lane.b32.xlu0 %v568, 17
        %v571 = vpop.permute.xlu0 %570
        %572 = vrot.lane.b32.xlu0 %v569, 17
        %v573 = vpop.permute.xlu0 %572
        %v574 = vsel %vm370, %v571, %v573
        %v575 = vsel %vm370, %v573, %v571
        %v576 = vld [vmem:[#allocation6] sm:$0xff]
        %v577 = vld [vmem:[#allocation6 + $0x8] sm:$0xff]
        %v578 = vmul.f32 %v575, %v576
        %v579 = vmul.f32 %v574, %v577
        %580 = vst [vmem:[#allocation2] sm:$0xff] %v578
        %581 = vst [vmem:[#allocation2 + $0x8] sm:$0xff] %v579
        %582 = vrot.lane.b32.xlu0 %v568, 16
        %v583 = vpop.permute.xlu0 %582
        %584 = vrot.lane.b32.xlu0 %v569, 16
        %v585 = vpop.permute.xlu0 %584
        %v586 = vsel %vm383, %v583, %v585
        %v587 = vsel %vm383, %v585, %v583
        %v588 = vld [vmem:[#allocation6 + $0x10] sm:$0xff]
        %v589 = vld [vmem:[#allocation6 + $0x18] sm:$0xff]
        %v590 = vmul.f32 %v587, %v588
        %v591 = vmul.f32 %v586, %v589
        %592 = vst [vmem:[#allocation2 + $0x10] sm:$0xff] %v590
        %593 = vst [vmem:[#allocation2 + $0x18] sm:$0xff] %v591
        %594 = vrot.lane.b32.xlu0 %v568, 15
        %v595 = vpop.permute.xlu0 %594
        %596 = vrot.lane.b32.xlu0 %v569, 15
        %v597 = vpop.permute.xlu0 %596
        %v598 = vsel %vm396, %v595, %v597
        %v599 = vsel %vm396, %v597, %v595
        %v600 = vld [vmem:[#allocation6 + $0x20] sm:$0xff]
        %v601 = vld [vmem:[#allocation6 + $0x28] sm:$0xff]
        %v602 = vmul.f32 %v599, %v600
        %v603 = vmul.f32 %v598, %v601
        %604 = vst [vmem:[#allocation2 + $0x20] sm:$0xff] %v602
        %605 = vst [vmem:[#allocation2 + $0x28] sm:$0xff] %v603
        %606 = vrot.lane.b32.xlu0 %v568, 1
        %v607 = vpop.permute.xlu0 %606
        %608 = vrot.lane.b32.xlu0 %v569, 1
        %v609 = vpop.permute.xlu0 %608
        %v610 = vsel %vm409, %v607, %v609
        %v611 = vsel %vm409, %v609, %v607
        %v612 = vld [vmem:[#allocation6 + $0x30] sm:$0xff]
        %v613 = vld [vmem:[#allocation6 + $0x38] sm:$0xff]
        %v614 = vmul.f32 %v611, %v612
        %v615 = vmul.f32 %v610, %v613
        %616 = vst [vmem:[#allocation2 + $0x30] sm:$0xff] %v614
        %617 = vst [vmem:[#allocation2 + $0x38] sm:$0xff] %v615
        %618 = vst [vmem:[#allocation2 + $0x40] sm:$0xff] %v568
        %619 = vst [vmem:[#allocation2 + $0x48] sm:$0xff] %v569
        %620 = vrot.lane.b32.xlu0 %v568, 127
        %v621 = vpop.permute.xlu0 %620
        %622 = vrot.lane.b32.xlu0 %v569, 127
        %v623 = vpop.permute.xlu0 %622
        %v624 = vsel %vm424, %v621, %v623
        %v625 = vsel %vm424, %v623, %v621
        %v626 = vld [vmem:[#allocation6 + $0x50] sm:$0xff]
        %v627 = vld [vmem:[#allocation6 + $0x58] sm:$0xff]
        %v628 = vmul.f32 %v624, %v626
        %v629 = vmul.f32 %v625, %v627
        %630 = vst [vmem:[#allocation2 + $0x50] sm:$0xff] %v628
        %631 = vst [vmem:[#allocation2 + $0x58] sm:$0xff] %v629
        %632 = vrot.lane.b32.xlu0 %v568, 113
        %v633 = vpop.permute.xlu0 %632
        %634 = vrot.lane.b32.xlu0 %v569, 113
        %v635 = vpop.permute.xlu0 %634
        %v636 = vsel %vm437, %v633, %v635
        %v637 = vsel %vm437, %v635, %v633
        %v638 = vld [vmem:[#allocation6 + $0x60] sm:$0xff]
        %v639 = vld [vmem:[#allocation6 + $0x68] sm:$0xff]
        %v640 = vmul.f32 %v636, %v638
        %v641 = vmul.f32 %v637, %v639
        %642 = vst [vmem:[#allocation2 + $0x60] sm:$0xff] %v640
        %643 = vst [vmem:[#allocation2 + $0x68] sm:$0xff] %v641
        %644 = vrot.lane.b32.xlu0 %v568, 112
        %v645 = vpop.permute.xlu0 %644
        %646 = vrot.lane.b32.xlu0 %v569, 112
        %v647 = vpop.permute.xlu0 %646
        %v648 = vsel %vm450, %v645, %v647
        %v649 = vsel %vm450, %v647, %v645
        %v650 = vld [vmem:[#allocation6 + $0x70] sm:$0xff]
        %v651 = vld [vmem:[#allocation6 + $0x78] sm:$0xff]
        %v652 = vmul.f32 %v648, %v650
        %v653 = vmul.f32 %v649, %v651
        %654 = vst [vmem:[#allocation2 + $0x70] sm:$0xff] %v652
        %655 = vst [vmem:[#allocation2 + $0x78] sm:$0xff] %v653
        %656 = vrot.lane.b32.xlu0 %v568, 111
        %v657 = vpop.permute.xlu0 %656
        %658 = vrot.lane.b32.xlu0 %v569, 111
        %v659 = vpop.permute.xlu0 %658
        %v660 = vsel %vm463, %v657, %v659
        %v661 = vsel %vm463, %v659, %v657
        %v662 = vld [vmem:[#allocation6 + $0x80] sm:$0xff]
        %v663 = vld [vmem:[#allocation6 + $0x88] sm:$0xff]
        %v664 = vmul.f32 %v660, %v662
        %v665 = vmul.f32 %v661, %v663
        %666 = vst [vmem:[#allocation2 + $0x80] sm:$0xff] %v664
        %667 = vst [vmem:[#allocation2 + $0x88] sm:$0xff] %v665
        %v668 = vld [vmem:[#allocation9] sm:$0xff]
        %v669 = vld [vmem:[#allocation2] sm:$0xff]
        %v670 = vld [vmem:[#allocation2 + $0x8] sm:$0xff]
        %v671 = vld [vmem:[#allocation2 + $0x10] sm:$0xff]
        %v672 = vld [vmem:[#allocation2 + $0x18] sm:$0xff]
        %v673 = vld [vmem:[#allocation2 + $0x20] sm:$0xff]
        %v674 = vld [vmem:[#allocation2 + $0x28] sm:$0xff]
        %v675 = vld [vmem:[#allocation2 + $0x30] sm:$0xff]
        %v676 = vld [vmem:[#allocation2 + $0x38] sm:$0xff]
        %v677 = vld [vmem:[#allocation2 + $0x40] sm:$0xff]
        %v678 = vld [vmem:[#allocation2 + $0x48] sm:$0xff]
        %v679 = vld [vmem:[#allocation2 + $0x50] sm:$0xff]
        %v680 = vld [vmem:[#allocation2 + $0x58] sm:$0xff]
        %v681 = vld [vmem:[#allocation2 + $0x60] sm:$0xff]
        %v682 = vld [vmem:[#allocation2 + $0x68] sm:$0xff]
        %v683 = vld [vmem:[#allocation2 + $0x70] sm:$0xff]
        %v684 = vld [vmem:[#allocation2 + $0x78] sm:$0xff]
        %v685 = vld [vmem:[#allocation2 + $0x80] sm:$0xff]
        %v686 = vld [vmem:[#allocation2 + $0x88] sm:$0xff]
        %v687 = vld [vmem:[%s5] sm:$0xff]
        %v688 = vld [vmem:[%s5 + $0x8] sm:$0xff]
        %v690 = vsel %vm493, %v668, 0
        %692 = vmatprep.subr.mxu0 %v670
        %693 = vmatpush1.msra.mxu0 %v669
        %694 = vmatprep.subr.mxu0 %v672
        %695 = vmatpush1.msra.mxu0 %v671
        %696 = vmatprep.subr.mxu0 %v674
        %697 = vmatpush1.msra.mxu0 %v673
        %698 = vmatprep.subr.mxu0 %v676
        %699 = vmatpush1.msra.mxu0 %v675
        %700 = vmatprep.subr.mxu0 %v678
        %701 = vmatpush1.msra.mxu0 %v677
        %702 = vmatprep.subr.mxu0 %v680
        %703 = vmatpush1.msra.mxu0 %v679
        %704 = vmatprep.subr.mxu0 %v682
        %705 = vmatpush1.msra.mxu0 %v681
        %706 = vmatprep.subr.mxu0 %v684
        %707 = vmatpush1.msra.mxu0 %v683
        %708 = vmatprep.subr.mxu0 %v686
        %709 = vmatpush1.msra.mxu0 %v685
        %710 = vmatprep.subr.mxu0 0.0
        %711 = vmatpush1.msra.mxu0 0.0
        %712 = vmatprep.subr.mxu0 0.0
        %713 = vmatpush1.msra.mxu0 0.0
        %714 = vmatprep.subr.mxu0 0.0
        %715 = vmatpush1.msra.mxu0 0.0
        %716 = vmatprep.subr.mxu0 0.0
        %717 = vmatpush1.msra.mxu0 0.0
        %718 = vmatprep.subr.mxu0 0.0
        %719 = vmatpush1.msra.mxu0 0.0
        %720 = vmatprep.subr.mxu0 0.0
        %721 = vmatpush1.msra.mxu0 0.0
        %722 = vmatprep.subr.mxu0 0.0
        %723 = vmatpush1.msra.mxu0 0.0
        %724 = vmatprep.subr.mxu0 0.0
        %725 = vmatpush1.msra.mxu0 0.0
        %726 = vmatprep.subr.mxu0 0.0
        %727 = vmatpush1.msra.mxu0 0.0
        %728 = vmatprep.subr.mxu0 0.0
        %729 = vmatpush1.msra.mxu0 0.0
        %730 = vmatprep.subr.mxu0 0.0
        %731 = vmatpush1.msra.mxu0 0.0
        %732 = vmatprep.subr.mxu0 0.0
        %733 = vmatpush1.msra.mxu0 0.0
        %734 = vmatprep.subr.mxu0 0.0
        %735 = vmatpush1.msra.mxu0 0.0
        %736 = vmatprep.subr.mxu0 0.0
        %737 = vmatpush1.msra.mxu0 0.0
        %738 = vmatprep.subr.mxu0 0.0
        %739 = vmatpush1.msra.mxu0 0.0
        %740 = vmatprep.subr.mxu0 0.0
        %741 = vmatpush1.msra.mxu0 0.0
        %742 = vmatprep.subr.mxu0 0.0
        %743 = vmatpush1.msra.mxu0 0.0
        %744 = vmatprep.subr.mxu0 0.0
        %745 = vmatpush1.msra.mxu0 0.0
        %746 = vmatprep.subr.mxu0 0.0
        %747 = vmatpush1.msra.mxu0 0.0
        %748 = vmatprep.subr.mxu0 0.0
        %749 = vmatpush1.msra.mxu0 0.0
        %750 = vmatprep.subr.mxu0 0.0
        %751 = vmatpush1.msra.mxu0 0.0
        %752 = vmatprep.subr.mxu0 0.0
        %753 = vmatpush1.msra.mxu0 0.0
        %754 = vmatprep.subr.mxu0 0.0
        %755 = vmatpush1.msra.mxu0 0.0
        %756 = vmatprep.mubr.f32.mxu0 0.0
        %757 = vmatmul.mubr.f32.gmra.mrb[0].mxu0 %v690
        %v758 = vpop.f32.mrb[0].mxu0
        %v759 = vadd.f32 %v687, %v758
        %v760 = vpop.f32.mrb[0].mxu0
        %v761 = vadd.f32 %v688, %v760
        %762 = vdwg.mxu0
        %v763 = vadd.f32 %v759, %v761
        %764 = vadd.xlane.f32.xlu0 %v763
        %v765 = vpop.xlane.xlu0 %764
        %v766 = vmul.f32 %v765, 0.00390625
        %v767 = vld [vmem:[%s6] sm:$0xff]
        %v768 = vmul.f32 %v766, %v767
        %vm769 = vcmask 15360
        %v770 = vsel %vm769, %v768, 0.0
        %v771 = vrot.slane %v770, 4
        %v772 = vadd.f32 %v770, %v771
        %v773 = vrot.slane %v772, 2
        %v774 = vadd.f32 %v772, %v773
        %v775 = vrot.slane %v774, 1
        %v776 = vadd.f32 %v774, %v775
        %v777 = vmax.f32 %v776, 0.0
        %v778 = vld [vmem:[%s7] sm:$0xff]
        %v779 = vmul.f32 %v778, %v777
        %v780 = vsel %vm769, %v779, 0.0
        %781 = vadd.xlane.f32.xlu0 %v780
        %v782 = vpop.xlane.xlu0 %781
        %v783 = vxor.u32 %v782, 2147483648
        %v784 = vmul.f32 %v783, 1.442695
        %v785 = vpow.pop %v784
        %v786 = vadd.f32 %v785, 1.0
        %v787 = vrcp.pop %v786
        %v788 = vmul.f32 1.0, %v787
        %v789 = vmul.f32 %v362, %v788
        %v790 = vmul.f32 %v363, %v788
        %791 = vst [vmem:[%s361] sm:$0xff] %v789
        %792 = vst [vmem:[%s361 + $0x8] sm:$0xff] %v790
        %s793 = sand.u32 %s208, 1
        %s794 = scalar_lea.sflag [#allocation5], %s793
        %s795 = sand.u32 %s208, 1
        %s796 = smul.addr %s795, 16
        %s797 = scalar_lea.vmem [#allocation11], %s796
        // Predicated region
        $region69: #{tpu_custom_call.1} parent=51 // pred_check
          %p798 = pneg %p218
        $region70: #{tpu_custom_call.1} parent=51 // pred_check_branch
          %800 = sbr.rel (%p798) target = $region72
        $region71: #{tpu_custom_call.1} parent=51 // pred_region
          %s802 = ssub.s32 256, 256
          %803 = vsyncadd %s794, %s802
          %s804 = smul.addr %s27, 2
          %s805 = smul.addr %s804, 128
          %s806 = scalar_lea.hbm %s8, %s805
          %s808 = sshll.u32 %s797, 4
          %s809 = int_to_ptr.vmem [resolvable:$true] %s808
          %811 = dma.vmem_to_hbm [thread:$0]  %s809, 256, %s806, %s794
        $region72: #{tpu_custom_call.1} parent=51 // pred_fallthru
          _
      $region52: #{tpu_custom_call.1} parent=5 // pred_fallthru
        _
      %p812 = scmp.le.s32.totalorder 2, %s22
      // Predicated region
      $region73: #{tpu_custom_call.1} parent=5 // pred_check
        %p813 = pneg %p812
      $region74: #{tpu_custom_call.1} parent=5 // pred_check_branch
        %815 = sbr.rel (%p813) target = $region76
      $region75: #{tpu_custom_call.1} parent=5 // pred_region
        %s816 = ssub.s32 %s22, 2
        // Predicated region
        $region77: #{tpu_custom_call.1} parent=75 // pred_check
          %p817 = pneg %p224
        $region78: #{tpu_custom_call.1} parent=75 // pred_check_branch
          %819 = sbr.rel (%p817) target = $region80
        $region79: #{tpu_custom_call.1} parent=75 // pred_region
          %s820 = sand.u32 %s209, 1
          %s821 = scalar_lea.sflag [#allocation5], %s820
          %s822 = sand.u32 %s209, 1
          %s823 = smul.addr %s822, 16
          %s824 = scalar_lea.vmem [#allocation11], %s823
          %825 = dma.done %s821, 256
        $region80: #{tpu_custom_call.1} parent=75 // pred_fallthru
          _
      $region76: #{tpu_custom_call.1} parent=5 // pred_fallthru
        _
    $region6: #{tpu_custom_call.1} parent=1 // loop_footer
      %s26 = sadd.s32 1, %s22
    $region7: #{tpu_custom_call.1} parent=1 // loop_footer_branch
      %21 = sbr.rel target = $region3
    $region8: #{tpu_custom_call.1} parent=1 // loop_exit
      _
    %826 = vsyncpa [#allocation4], 1
    %s827 = scalar_lea.sflag [#allocation4], 1
    %828 = vsyncpa %s827, 1
    %829 = vsyncpa [#allocation7], 1
    %830 = vsyncpa [#allocation10], 1
    %831 = vsyncpa [#allocation5], 1
    %s832 = scalar_lea.sflag [#allocation5], 1
    %833 = vsyncpa %s832, 1

</llo_original>
